<compile_context>
chip_gen: v5e
topology: v5e:2x2
jax: 0.10.0
libtpu: 0.0.40
codegen_flags: <defaults>
</compile_context>

<pallas_src>
import functools
import math

import numpy as np
import jax
import jax.numpy as jnp
from jax import lax
from jax.experimental import pallas as pl
from jax.experimental.pallas import tpu as pltpu


_MAX_PACK = 4                      # cap on row-packing factor g (perf review)
_MAX_TM = 2048                     # never tile more than 2048 packed rows per step
_VMEM_BUDGET = 24 * 1024 * 1024    # conservative block budget (fits v7x scoped VMEM)
_VMEM_LIMIT = 32 * 1024 * 1024     # scoped-VMEM limit passed to Mosaic


# ---------------------------------------------------------------------------
# Kernels
# ---------------------------------------------------------------------------
def _upsample_kernel(x_ref, q_ref, o_ref, *, precision):
    # x_ref: (TM, g*W) packed input rows; q_ref: (g*W, N) 0/1 repeat matrix.
    o_ref[...] = jnp.dot(
        x_ref[...],
        q_ref[...],
        preferred_element_type=jnp.float32,
        precision=precision,
    ).astype(o_ref.dtype)


def _upsample_fill_kernel(x_ref, q_ref, const_ref, o_ref, *, precision):
    # fill_const=True path: (x - c) scattered to block corners, + c everywhere.
    c = const_ref[0]
    y = jnp.dot(
        x_ref[...] - c,
        q_ref[...],
        preferred_element_type=jnp.float32,
        precision=precision,
    )
    o_ref[...] = (y + c).astype(o_ref.dtype)


# ---------------------------------------------------------------------------
# Repeat-matrix construction (cached)
# ---------------------------------------------------------------------------
@functools.lru_cache(maxsize=None)
def _repeat_matrix_np(W, nr1, nr2, g, n_cols, fill_const):
    """Q[k, n] = 1 iff packed-output lane n copies packed-input lane k (0 for pad lanes)."""
    K = g * W
    Wout = W * nr2
    Q = np.zeros((K, n_cols), dtype=np.float32)
    for j in range(g * nr1):            # local output row inside a packed row
        i, r = divmod(j, nr1)           # local input row, H-repeat index
        for w_out in range(Wout):
            w_in, s = divmod(w_out, nr2)
            if fill_const and (r != 0 or s != 0):
                continue                # fill_const: only the (0, 0) corner copies x
            Q[i * W + w_in, j * Wout + w_out] = 1.0
    return Q


@functools.lru_cache(maxsize=None)
def _repeat_matrix(W, nr1, nr2, g, n_cols, fill_const, dtype_name):
    return jnp.asarray(_repeat_matrix_np(W, nr1, nr2, g, n_cols, fill_const), dtype=dtype_name)


# ---------------------------------------------------------------------------
# Packing / tiling helpers
# ---------------------------------------------------------------------------
def _choose_pack(base):
    """Row-packing g (<= _MAX_PACK) plus lane padding so g*base + pad is a multiple of 128."""
    g = math.lcm(base, 128) // base
    if g <= _MAX_PACK:
        return g, 0
    # Awkward width: keep g = 1 and lane-pad the packed output width to the
    # next multiple of 128 instead (zero Q columns, sliced off in the wrapper).
    return 1, (-base) % 128


def _choose_row_tile(Mp, K, N, itemsize):
    """VMEM-budgeted row tile (multiple of the sublane packing); used with a cdiv grid."""
    row_align = 8 * max(1, 4 // itemsize)            # (8,128) tiling, packed sublanes
    per_row = 2 * (K + N) * itemsize                 # double-buffered x-block + out-block
    avail = _VMEM_BUDGET - 2 * K * N * itemsize      # Q stays resident (2 buffers)
    tm = max(row_align, avail // per_row // row_align * row_align)
    tm = min(tm, _MAX_TM)
    # Keep at least ~8 grid steps so DMA/compute overlap (and v7x's two
    # TensorCores on the "parallel" axis) have something to pipeline.
    tm = min(tm, max(row_align, pl.cdiv(Mp, 8) // row_align * row_align))
    return tm


# ---------------------------------------------------------------------------
# Wrapper
# ---------------------------------------------------------------------------
def upsample2d(x, nr1=2, nr2=2, fill_const=False, const=0.0):
    if not jnp.issubdtype(x.dtype, jnp.floating):
        # TODO(synk): integer dtypes would need a non-MXU copy path (MXU rounds >24-bit ints).
        raise NotImplementedError("upsample2d Pallas kernel supports floating dtypes only")

    B, C, H, W = x.shape
    M = B * C * H
    base = nr1 * W * nr2                       # packed output lanes per input row
    itemsize = jnp.dtype(x.dtype).itemsize

    g, lane_pad = _choose_pack(base)
    M_pad = pl.cdiv(M, g) * g
    row_pad = M_pad - M
    Mp = M_pad // g
    K = g * W
    N = g * base + lane_pad                    # multiple of 128 by construction

    x_flat = x.reshape(M, W)
    if row_pad:
        x_flat = jnp.pad(x_flat, ((0, row_pad), (0, 0)))
    x2 = x_flat.reshape(Mp, K)

    Q = _repeat_matrix(W, nr1, nr2, g, N, bool(fill_const), jnp.dtype(x.dtype).name)

    TM = _choose_row_tile(Mp, K, N, itemsize)
    grid = (pl.cdiv(Mp, TM),)                  # ragged last block handled by Pallas

    x_spec = pl.BlockSpec((TM, K), lambda i: (i, 0))
    q_spec = pl.BlockSpec((K, N), lambda i: (0, 0))   # grid-invariant -> fetched once
    o_spec = pl.BlockSpec((TM, N), lambda i: (i, 0))

    # bf16: single MXU pass is exact (0/1 Q, one nonzero per column, f32 accumulate).
    # f32: HIGHEST keeps the copy bit-accurate (Mosaic lowers only DEFAULT/HIGHEST;
    #      DEFAULT would round f32 operands to bf16).
    precision = (lax.Precision.DEFAULT if x.dtype == jnp.bfloat16
                 else lax.Precision.HIGHEST)

    compiler_params = pltpu.CompilerParams(
        dimension_semantics=("parallel",),
        vmem_limit_bytes=_VMEM_LIMIT,
    )
    cost = pl.CostEstimate(
        flops=2 * Mp * K * N,
        transcendentals=0,
        bytes_accessed=(Mp * K + Mp * N + K * N) * itemsize,
    )

    if not fill_const:
        out2 = pl.pallas_call(
            functools.partial(_upsample_kernel, precision=precision),
            out_shape=jax.ShapeDtypeStruct((Mp, N), x.dtype),
            grid_spec=pltpu.PrefetchScalarGridSpec(
                num_scalar_prefetch=0,
                grid=grid,
                in_specs=[x_spec, q_spec],
                out_specs=o_spec,
            ),
            compiler_params=compiler_params,
            cost_estimate=cost,
        )(x2, Q)
    else:
        const_arr = jnp.asarray([const], dtype=x.dtype)
        out2 = pl.pallas_call(
            functools.partial(_upsample_fill_kernel, precision=precision),
            out_shape=jax.ShapeDtypeStruct((Mp, N), x.dtype),
            grid_spec=pltpu.PrefetchScalarGridSpec(
                num_scalar_prefetch=0,
                grid=grid,
                in_specs=[
                    x_spec,
                    q_spec,
                    pl.BlockSpec(memory_space=pltpu.MemorySpace.SMEM),  # const scalar
                ],
                out_specs=o_spec,
            ),
            compiler_params=compiler_params,
            cost_estimate=cost,
        )(x2, Q, const_arr)

    if lane_pad:
        out2 = out2[:, : g * base]
    out_rows = out2.reshape(M_pad * nr1, W * nr2)
    if row_pad:
        out_rows = out_rows[: M * nr1]
    return out_rows.reshape(B, C, H * nr1, W * nr2)


# ---------------------------------------------------------------------------
# Pure-JAX reference of Upsample2D.forward
# ---------------------------------------------------------------------------
def _upsample2d_ref(x, nr1=2, nr2=2, fill_const=False, const=0.0):
    B, C, H, W = x.shape
    if not fill_const:
        y = jnp.broadcast_to(x[:, :, :, None, :, None], (B, C, H, nr1, W, nr2))
        return y.reshape(B, C, H * nr1, W * nr2)
    xm = x - const
    y = jnp.zeros((B, C, H, nr1, W, nr2), dtype=x.dtype)
    y = y.at[:, :, :, 0, :, 0].set(xm)
    return y.reshape(B, C, H * nr1, W * nr2) + const


if __name__ == "__main__":
    key = jax.random.PRNGKey(0)

    # Module-default config (nr1 = nr2 = 2, fill_const = False) on the demo shape (NCHW).
    x = jax.random.normal(key, (2, 4, 16, 16), dtype=jnp.float32)
    out = jax.block_until_ready(upsample2d(x, nr1=2, nr2=2, fill_const=False))
    assert out.shape == (2, 4, 32, 32)
    ref = _upsample2d_ref(x, 2, 2, False)
    np.testing.assert_allclose(np.asarray(out), np.asarray(ref), rtol=1e-6, atol=1e-6)

    # fill_const=True path (module initializes const = 0; also a non-zero const).
    for c in (0.0, 0.37):
        out_fc = jax.block_until_ready(upsample2d(x, 2, 2, fill_const=True, const=c))
        ref_fc = _upsample2d_ref(x, 2, 2, fill_const=True, const=c)
        np.testing.assert_allclose(np.asarray(out_fc), np.asarray(ref_fc), rtol=1e-6, atol=1e-6)

    # bf16 input: exercises the single-pass (DEFAULT precision) MXU path; bit-exact.
    xb = jax.random.normal(jax.random.PRNGKey(1), (2, 4, 16, 16)).astype(jnp.bfloat16)
    out_b = jax.block_until_ready(upsample2d(xb))
    np.testing.assert_array_equal(np.asarray(out_b), np.asarray(_upsample2d_ref(xb)))

    # Ragged cdiv grid (packed rows not a multiple of TM).
    xr = jax.random.normal(jax.random.PRNGKey(2), (2, 3, 10, 16), dtype=jnp.float32)
    out_r = jax.block_until_ready(upsample2d(xr))
    np.testing.assert_allclose(np.asarray(out_r), np.asarray(_upsample2d_ref(xr)),
                               rtol=1e-6, atol=1e-6)

    # Row-padding path (M not a multiple of the packing factor g).
    xp = jax.random.normal(jax.random.PRNGKey(3), (1, 3, 3, 16), dtype=jnp.float32)
    out_p = jax.block_until_ready(upsample2d(xp))
    np.testing.assert_allclose(np.asarray(out_p), np.asarray(_upsample2d_ref(xp)),
                               rtol=1e-6, atol=1e-6)

    # Lane-padding path (awkward W where the natural packing factor exceeds the cap).
    xw = jax.random.normal(jax.random.PRNGKey(4), (1, 2, 5, 12), dtype=jnp.float32)
    out_w = jax.block_until_ready(upsample2d(xw))
    np.testing.assert_allclose(np.asarray(out_w), np.asarray(_upsample2d_ref(xw)),
                               rtol=1e-6, atol=1e-6)

    print("KERNEL_OK")
</pallas_src>

<mosaic_0001>
module attributes {stable_mosaic.version = 11 : i64} {
  func.func @_upsample_kernel(%arg0: i32, %arg1: memref<8x32xf32, #tpu.memory_space<vmem>>, %arg2: memref<32x128xf32, #tpu.memory_space<vmem>>, %arg3: memref<8x128xf32, #tpu.memory_space<vmem>>) attributes {dimension_semantics = [#tpu.dimension_semantics<parallel>], iteration_bounds = array<i64: 8>, scalar_prefetch = 0 : i64, scratch_operands = 0 : i64, tpu.core_type = #tpu.core_type<tc>, window_params = [{transform_indices = @transform_0, window_bounds = array<i64: 8, 32>}, {pipeline_mode = #tpu.pipeline_mode<synchronous>, transform_indices = @transform_1, window_bounds = array<i64: 32, 128>}, {transform_indices = @transform_2, window_bounds = array<i64: 8, 128>}]} {
    %c0 = arith.constant 0 : index
    %c0_0 = arith.constant 0 : index
    %0 = vector.load %arg1[%c0, %c0_0] : memref<8x32xf32, #tpu.memory_space<vmem>>, vector<8x32xf32>
    %c0_1 = arith.constant 0 : index
    %c0_2 = arith.constant 0 : index
    %1 = vector.load %arg2[%c0_1, %c0_2] : memref<32x128xf32, #tpu.memory_space<vmem>>, vector<32x128xf32>
    %cst = arith.constant dense<0.000000e+00> : vector<8x128xf32>
    %2 = tpu.matmul %0, %1, %cst {dimension_numbers = #tpu.dot_dimension_numbers<[1], [0], [0], [1], [0, 0, 1, 1], [], []>, precision = #tpu.contract_precision<fp32>} : vector<8x32xf32>, vector<32x128xf32>, vector<8x128xf32> -> vector<8x128xf32>
    %c0_3 = arith.constant 0 : index
    %c0_4 = arith.constant 0 : index
    %3 = vector.load %arg3[%c0_3, %c0_4] : memref<8x128xf32, #tpu.memory_space<vmem>>, vector<8x128xf32>
    tpu.vector_store %arg3[%c0_3, %c0_4], %2 {strides = array<i32>} : memref<8x128xf32, #tpu.memory_space<vmem>>, vector<8x128xf32>,
    return
  }
  func.func @transform_0(%arg0: i32) -> (i32, i32) {
    %c0_i32 = arith.constant 0 : i32
    %c0_i32_0 = arith.constant 0 : i32
    return %arg0, %c0_i32 : i32, i32
  }
  func.func @transform_1(%arg0: i32) -> (i32, i32) {
    %c0_i32 = arith.constant 0 : i32
    %c0_i32_0 = arith.constant 0 : i32
    %c0_i32_1 = arith.constant 0 : i32
    return %c0_i32, %c0_i32_0 : i32, i32
  }
  func.func @transform_2(%arg0: i32) -> (i32, i32) {
    %c0_i32 = arith.constant 0 : i32
    %c0_i32_0 = arith.constant 0 : i32
    return %arg0, %c0_i32 : i32, i32
  }
}

</mosaic_0001>

<llo_original>
// kernel: tpu_custom_call.1
$region0: #{tpu_custom_call.1}
  #allocation0 [shape = 'u32[]', space=smem, size = 0x4, offset = 0x4, fixed_abs, tag = 'smem constant byte address 0x4 - core index']
  #allocation1 [shape = 'u32[72,128]{1,0:T(1,128)}', space=vmem, size = 0x9000, scoped, tag = 'internal scratch']
  %s0 = inlined_call_operand.vmem [shape: f32[64,32], index: 0, kind: input, shape index: {}]
  %s1 = inlined_call_operand.vmem [shape: f32[32,128], index: 1, kind: input, shape index: {}]
  %s2 = inlined_call_operand.hbm [shape: f32[64,128], index: 2, kind: output, shape index: {}]
  %s3 = sld [smem:[#allocation0]]
  $region41: #{tpu_custom_call.1} parent=0
    _
  %s5 = ssub.s32 1, %s3
  %s6 = scalar_select 0, %s5, %s3
  $region1: #{tpu_custom_call.1} parent=0
    #allocation2 [shape = 'u8[8192]{0}', space=vmem, size = 0x2000, scoped, tag = 'output window, operand 0']
    #allocation3 [shape = 's32[2]{0}', space=sflag, size = 0x8, scoped, tag = 'scoped memory for tpu_custom_call.1']
    %7 = vsyncpa [#allocation3], 0
    %s8 = scalar_lea.sflag [#allocation3], 1
    %9 = vsyncpa %s8, 0
    loop: start=0, step=1, limit=10
    $region2: #{tpu_custom_call.1} parent=1 // loop_pre_header
      _
    $region3: #{tpu_custom_call.1} parent=1 // loop_header
      %s11 = sphi 0, %s15
      %p12 = scmp.ge.s32.totalorder %s11, 10
      %s21 = sphi 0, %s23
      %s24 = sphi 0, %s21
      %s25 = sphi 0, %s24
      %s41 = sphi 0, %s25
      %s45 = sphi 0, %s45
      %s47 = sphi 0, %s45
      %s48 = sphi 0, %s47
      %s62 = sphi 0, %s48
      %s68 = sphi 0, %s70
      %s71 = sphi 0, %s68
      %s72 = sphi 0, %s71
      %s88 = sphi 0, %s72
    $region4: #{tpu_custom_call.1} parent=1 // loop_header_branch
      %14 = sbr.rel (%p12) target = $region8
    $region5: #{tpu_custom_call.1} parent=1 // loop_body
      %s16 = ssub.s32 %s11, 1
      %s17 = ssub.s32 %s11, 2
      %s18 = sadd.s32 %s11, 1
      %s19 = ssub.s32 %s11, %s18
      %p20 = scmp.eq.s32.totalorder %s19, 0
      %s22 = sadd.s32 %s21, 1
      %s23 = scalar_select %p20, %s21, %s22
      %p26 = pneg %p20
      %p27 = scmp.eq.s32.totalorder %s11, 7
      %p28 = por %p26, %p27
      %p29 = scmp.ne.s32.totalorder %s21, %s24
      %p30 = scmp.eq.s32.totalorder %s11, 0
      %p31 = por %p29, %p30
      %p32 = scmp.ne.s32.totalorder %s21, %s24
      %p33 = scmp.eq.s32.totalorder %s16, 7
      %p34 = por %p32, %p33
      %p35 = scmp.ne.s32.totalorder %s24, %s25
      %p36 = scmp.eq.s32.totalorder %s16, 0
      %p37 = por %p35, %p36
      %p38 = scmp.ne.s32.totalorder %s24, %s25
      %p39 = scmp.eq.s32.totalorder %s17, 7
      %p40 = por %p38, %p39
      %p42 = scmp.ne.s32.totalorder %s25, %s41
      %p43 = scmp.eq.s32.totalorder %s17, 0
      %p44 = por %p42, %p43
      %s46 = sadd.s32 %s45, 1
      %p49 = scmp.eq.s32.totalorder %s11, 7
      %p50 = scmp.ne.s32.totalorder %s45, %s47
      %p51 = scmp.eq.s32.totalorder %s11, 0
      %p52 = por %p50, %p51
      %p53 = scmp.ne.s32.totalorder %s45, %s47
      %p54 = scmp.eq.s32.totalorder %s16, 7
      %p55 = por %p53, %p54
      %p56 = scmp.ne.s32.totalorder %s47, %s48
      %p57 = scmp.eq.s32.totalorder %s16, 0
      %p58 = por %p56, %p57
      %p59 = scmp.ne.s32.totalorder %s47, %s48
      %p60 = scmp.eq.s32.totalorder %s17, 7
      %p61 = por %p59, %p60
      %p63 = scmp.ne.s32.totalorder %s48, %s62
      %p64 = scmp.eq.s32.totalorder %s17, 0
      %p65 = por %p63, %p64
      %s66 = ssub.s32 %s11, %s18
      %p67 = scmp.eq.s32.totalorder %s66, 0
      %s69 = sadd.s32 %s68, 1
      %s70 = scalar_select %p67, %s68, %s69
      %p73 = pneg %p67
      %p74 = scmp.eq.s32.totalorder %s11, 7
      %p75 = por %p73, %p74
      %p76 = scmp.ne.s32.totalorder %s68, %s71
      %p77 = scmp.eq.s32.totalorder %s11, 0
      %p78 = por %p76, %p77
      %p79 = scmp.ne.s32.totalorder %s68, %s71
      %p80 = scmp.eq.s32.totalorder %s16, 7
      %p81 = por %p79, %p80
      %p82 = scmp.ne.s32.totalorder %s71, %s72
      %p83 = scmp.eq.s32.totalorder %s16, 0
      %p84 = por %p82, %p83
      %p85 = scmp.ne.s32.totalorder %s71, %s72
      %p86 = scmp.eq.s32.totalorder %s17, 7
      %p87 = por %p85, %p86
      %p89 = scmp.ne.s32.totalorder %s72, %s88
      %p90 = scmp.eq.s32.totalorder %s17, 0
      %p91 = por %p89, %p90
      %p92 = scmp.le.s32.totalorder 1, %s11
      %p93 = scmp.lt.s32.totalorder %s11, 9
      %p94 = pnand %p92, %p93
      %p95 = pneg %p94
      // Predicated region
      $region9: #{tpu_custom_call.1} parent=5 // pred_check
        _
      $region10: #{tpu_custom_call.1} parent=5 // pred_check_branch
        %97 = sbr.rel (%p94) target = $region12
      $region11: #{tpu_custom_call.1} parent=5 // pred_region
        %s98 = ssub.s32 %s11, 1
        // Predicated region
        $region13: #{tpu_custom_call.1} parent=11 // pred_check
          %p99 = pneg %p58
        $region14: #{tpu_custom_call.1} parent=11 // pred_check_branch
          %101 = sbr.rel (%p99) target = $region16
        $region15: #{tpu_custom_call.1} parent=11 // pred_region
          _
        $region16: #{tpu_custom_call.1} parent=11 // pred_fallthru
          _
      $region12: #{tpu_custom_call.1} parent=5 // pred_fallthru
        _
      %p102 = scmp.lt.s32.totalorder %s11, 8
      // Predicated region
      $region17: #{tpu_custom_call.1} parent=5 // pred_check
        %p103 = pneg %p102
      $region18: #{tpu_custom_call.1} parent=5 // pred_check_branch
        %105 = sbr.rel (%p103) target = $region20
      $region19: #{tpu_custom_call.1} parent=5 // pred_region
        // Predicated region
        $region21: #{tpu_custom_call.1} parent=19 // pred_check
          %p106 = pneg %p31
        $region22: #{tpu_custom_call.1} parent=19 // pred_check_branch
          %108 = sbr.rel (%p106) target = $region24
        $region23: #{tpu_custom_call.1} parent=19 // pred_region
          %p109 = scmp.lt.s32.totalorder %s11, 7
          %s110 = scalar_select %p109, %s11, 7
          %s111 = smul.addr %s110, 8
          %s112 = scalar_lea.vmem %s0, %s111
        $region24: #{tpu_custom_call.1} parent=19 // pred_fallthru
          _
      $region20: #{tpu_custom_call.1} parent=5 // pred_fallthru
        _
      %p113 = scmp.le.s32.totalorder 1, %s11
      %p114 = scmp.lt.s32.totalorder %s11, 9
      %p115 = pnand %p113, %p114
      %p116 = pneg %p115
      // Predicated region
      $region25: #{tpu_custom_call.1} parent=5 // pred_check
        _
      $region26: #{tpu_custom_call.1} parent=5 // pred_check_branch
        %118 = sbr.rel (%p115) target = $region28
      $region27: #{tpu_custom_call.1} parent=5 // pred_region
        %s119 = ssub.s32 %s11, 1
        %p120 = scmp.lt.s32.totalorder %s16, 7
        %s121 = scalar_select %p120, %s16, 7
        %s122 = smul.addr %s121, 8
        %s123 = scalar_lea.vmem %s0, %s122
        %p124 = pneg %p37
        %p125 = pneg %p34
        %p126 = pneg %p58
        %p127 = pneg %p55
        %p128 = pneg %p84
        %p129 = pneg %p81
        %s130 = sand.u32 %s71, 1
        %s131 = scalar_lea.sflag [#allocation3], %s130
        %s132 = sand.u32 %s71, 1
        %s133 = smul.addr %s132, 8
        %s134 = scalar_lea.vmem [#allocation2], %s133
        %p135 = scmp.lt.s32.totalorder %s16, 7
        %s136 = scalar_select %p135, %s16, 7
        %s137 = smul.addr %s136, 8
        %s138 = scalar_lea.vmem %s0, %s137
        %v139 = vld [vmem:[%s138] sm:$0xff]
        %v140 = vld [vmem:[%s1] sm:$0xff]
        %v141 = vld [vmem:[%s1 + $0x8] sm:$0xff]
        %v142 = vld [vmem:[%s1 + $0x10] sm:$0xff]
        %v143 = vld [vmem:[%s1 + $0x18] sm:$0xff]
        %vm144 = vcmask 261120
        %v146 = vsel %vm144, %v139, 0
        %148 = vmatpush.msra.mxu0 0.0
        %149 = vmatpush.msra.mxu0 0.0
        %150 = vmatpush.msra.mxu0 0.0
        %151 = vmatpush.msra.mxu0 0.0
        %152 = vmatpush.msra.mxu0 0.0
        %153 = vmatpush.msra.mxu0 0.0
        %154 = vmatpush.msra.mxu0 0.0
        %155 = vmatpush.msra.mxu0 0.0
        %156 = vmatpush.msra.mxu0 0.0
        %157 = vmatpush.msra.mxu0 0.0
        %158 = vmatpush.msra.mxu0 0.0
        %159 = vmatpush.msra.mxu0 0.0
        %v160 = vand.u32 %v143, 4294901760
        %161 = vmatpush.msra.mxu0 %v160
        %v162 = vand.u32 %v142, 4294901760
        %163 = vmatpush.msra.mxu0 %v162
        %v164 = vand.u32 %v141, 4294901760
        %165 = vmatpush.msra.mxu0 %v164
        %v166 = vand.u32 %v140, 4294901760
        %167 = vmatpush.msra.mxu0 %v166
        %v168 = vand.u32 %v146, 4294901760
        %v169 = vsub.f32 %v146, %v168
        %v170 = vand.u32 %v169, 4294901760
        %v171 = vsub.f32 %v169, %v170
        %v172 = vand.u32 %v171, 4294901760
        %173 = vmatmul.f32.gmra.mxu0 %v172
        %v174 = vpop.f32.mrf.mxu0
        %v175 = vadd.f32 0.0, %v174
        %176 = vdwg.mxu0
        %177 = vmatpush.msra.mxu0 0.0
        %178 = vmatpush.msra.mxu0 0.0
        %179 = vmatpush.msra.mxu0 0.0
        %180 = vmatpush.msra.mxu0 0.0
        %181 = vmatpush.msra.mxu0 0.0
        %182 = vmatpush.msra.mxu0 0.0
        %183 = vmatpush.msra.mxu0 0.0
        %184 = vmatpush.msra.mxu0 0.0
        %185 = vmatpush.msra.mxu0 0.0
        %186 = vmatpush.msra.mxu0 0.0
        %187 = vmatpush.msra.mxu0 0.0
        %188 = vmatpush.msra.mxu0 0.0
        %v189 = vand.u32 %v143, 4294901760
        %v190 = vsub.f32 %v143, %v189
        %v191 = vand.u32 %v190, 4294901760
        %v192 = vsub.f32 %v190, %v191
        %v193 = vand.u32 %v192, 4294901760
        %194 = vmatpush.msra.mxu0 %v193
        %v195 = vand.u32 %v142, 4294901760
        %v196 = vsub.f32 %v142, %v195
        %v197 = vand.u32 %v196, 4294901760
        %v198 = vsub.f32 %v196, %v197
        %v199 = vand.u32 %v198, 4294901760
        %200 = vmatpush.msra.mxu0 %v199
        %v201 = vand.u32 %v141, 4294901760
        %v202 = vsub.f32 %v141, %v201
        %v203 = vand.u32 %v202, 4294901760
        %v204 = vsub.f32 %v202, %v203
        %v205 = vand.u32 %v204, 4294901760
        %206 = vmatpush.msra.mxu0 %v205
        %v207 = vand.u32 %v140, 4294901760
        %v208 = vsub.f32 %v140, %v207
        %v209 = vand.u32 %v208, 4294901760
        %v210 = vsub.f32 %v208, %v209
        %v211 = vand.u32 %v210, 4294901760
        %212 = vmatpush.msra.mxu0 %v211
        %v213 = vand.u32 %v146, 4294901760
        %214 = vmatmul.f32.gmra.mxu0 %v213
        %v215 = vpop.f32.mrf.mxu0
        %v216 = vadd.f32 %v175, %v215
        %217 = vdwg.mxu0
        %218 = vmatpush.msra.mxu0 0.0
        %219 = vmatpush.msra.mxu0 0.0
        %220 = vmatpush.msra.mxu0 0.0
        %221 = vmatpush.msra.mxu0 0.0
        %222 = vmatpush.msra.mxu0 0.0
        %223 = vmatpush.msra.mxu0 0.0
        %224 = vmatpush.msra.mxu0 0.0
        %225 = vmatpush.msra.mxu0 0.0
        %226 = vmatpush.msra.mxu0 0.0
        %227 = vmatpush.msra.mxu0 0.0
        %228 = vmatpush.msra.mxu0 0.0
        %229 = vmatpush.msra.mxu0 0.0
        %v230 = vand.u32 %v143, 4294901760
        %v231 = vsub.f32 %v143, %v230
        %232 = vmatpush.msra.mxu0 %v231
        %v233 = vand.u32 %v142, 4294901760
        %v234 = vsub.f32 %v142, %v233
        %235 = vmatpush.msra.mxu0 %v234
        %v236 = vand.u32 %v141, 4294901760
        %v237 = vsub.f32 %v141, %v236
        %238 = vmatpush.msra.mxu0 %v237
        %v239 = vand.u32 %v140, 4294901760
        %v240 = vsub.f32 %v140, %v239
        %241 = vmatpush.msra.mxu0 %v240
        %v242 = vand.u32 %v146, 4294901760
        %v243 = vsub.f32 %v146, %v242
        %244 = vmatmul.f32.gmra.mxu0 %v243
        %v245 = vpop.f32.mrf.mxu0
        %v246 = vadd.f32 %v216, %v245
        %247 = vdwg.mxu0
        %248 = vmatpush.msra.mxu0 0.0
        %249 = vmatpush.msra.mxu0 0.0
        %250 = vmatpush.msra.mxu0 0.0
        %251 = vmatpush.msra.mxu0 0.0
        %252 = vmatpush.msra.mxu0 0.0
        %253 = vmatpush.msra.mxu0 0.0
        %254 = vmatpush.msra.mxu0 0.0
        %255 = vmatpush.msra.mxu0 0.0
        %256 = vmatpush.msra.mxu0 0.0
        %257 = vmatpush.msra.mxu0 0.0
        %258 = vmatpush.msra.mxu0 0.0
        %259 = vmatpush.msra.mxu0 0.0
        %v260 = vand.u32 %v143, 4294901760
        %261 = vmatpush.msra.mxu0 %v260
        %v262 = vand.u32 %v142, 4294901760
        %263 = vmatpush.msra.mxu0 %v262
        %v264 = vand.u32 %v141, 4294901760
        %265 = vmatpush.msra.mxu0 %v264
        %v266 = vand.u32 %v140, 4294901760
        %267 = vmatpush.msra.mxu0 %v266
        %v268 = vand.u32 %v146, 4294901760
        %v269 = vsub.f32 %v146, %v268
        %v270 = vand.u32 %v269, 4294901760
        %271 = vmatmul.f32.gmra.mxu0 %v270
        %v272 = vpop.f32.mrf.mxu0
        %v273 = vadd.f32 %v246, %v272
        %274 = vdwg.mxu0
        %275 = vmatpush.msra.mxu0 0.0
        %276 = vmatpush.msra.mxu0 0.0
        %277 = vmatpush.msra.mxu0 0.0
        %278 = vmatpush.msra.mxu0 0.0
        %279 = vmatpush.msra.mxu0 0.0
        %280 = vmatpush.msra.mxu0 0.0
        %281 = vmatpush.msra.mxu0 0.0
        %282 = vmatpush.msra.mxu0 0.0
        %283 = vmatpush.msra.mxu0 0.0
        %284 = vmatpush.msra.mxu0 0.0
        %285 = vmatpush.msra.mxu0 0.0
        %286 = vmatpush.msra.mxu0 0.0
        %v287 = vand.u32 %v143, 4294901760
        %v288 = vsub.f32 %v143, %v287
        %v289 = vand.u32 %v288, 4294901760
        %290 = vmatpush.msra.mxu0 %v289
        %v291 = vand.u32 %v142, 4294901760
        %v292 = vsub.f32 %v142, %v291
        %v293 = vand.u32 %v292, 4294901760
        %294 = vmatpush.msra.mxu0 %v293
        %v295 = vand.u32 %v141, 4294901760
        %v296 = vsub.f32 %v141, %v295
        %v297 = vand.u32 %v296, 4294901760
        %298 = vmatpush.msra.mxu0 %v297
        %v299 = vand.u32 %v140, 4294901760
        %v300 = vsub.f32 %v140, %v299
        %v301 = vand.u32 %v300, 4294901760
        %302 = vmatpush.msra.mxu0 %v301
        %v303 = vand.u32 %v146, 4294901760
        %304 = vmatmul.f32.gmra.mxu0 %v303
        %v305 = vpop.f32.mrf.mxu0
        %v306 = vadd.f32 %v273, %v305
        %307 = vdwg.mxu0
        %308 = vmatpush.msra.mxu0 0.0
        %309 = vmatpush.msra.mxu0 0.0
        %310 = vmatpush.msra.mxu0 0.0
        %311 = vmatpush.msra.mxu0 0.0
        %312 = vmatpush.msra.mxu0 0.0
        %313 = vmatpush.msra.mxu0 0.0
        %314 = vmatpush.msra.mxu0 0.0
        %315 = vmatpush.msra.mxu0 0.0
        %316 = vmatpush.msra.mxu0 0.0
        %317 = vmatpush.msra.mxu0 0.0
        %318 = vmatpush.msra.mxu0 0.0
        %319 = vmatpush.msra.mxu0 0.0
        %v320 = vand.u32 %v143, 4294901760
        %321 = vmatpush.msra.mxu0 %v320
        %v322 = vand.u32 %v142, 4294901760
        %323 = vmatpush.msra.mxu0 %v322
        %v324 = vand.u32 %v141, 4294901760
        %325 = vmatpush.msra.mxu0 %v324
        %v326 = vand.u32 %v140, 4294901760
        %327 = vmatpush.msra.mxu0 %v326
        %v328 = vand.u32 %v146, 4294901760
        %329 = vmatmul.f32.gmra.mxu0 %v328
        %v330 = vpop.f32.mrf.mxu0
        %v331 = vadd.f32 %v306, %v330
        %332 = vdwg.mxu0
        %333 = vst [vmem:[%s134] sm:$0xff] %v331
        %s334 = sand.u32 %s71, 1
        %s335 = scalar_lea.sflag [#allocation3], %s334
        %s336 = sand.u32 %s71, 1
        %s337 = smul.addr %s336, 8
        %s338 = scalar_lea.vmem [#allocation2], %s337
        // Predicated region
        $region29: #{tpu_custom_call.1} parent=27 // pred_check
          %p339 = pneg %p81
        $region30: #{tpu_custom_call.1} parent=27 // pred_check_branch
          %341 = sbr.rel (%p339) target = $region32
        $region31: #{tpu_custom_call.1} parent=27 // pred_region
          %343 = vsyncadd %s335, 0
          %s344 = smul.addr %s16, 8
          %s345 = scalar_lea.hbm %s2, %s344
          %s347 = sshll.u32 %s338, 4
          %s348 = int_to_ptr.vmem [resolvable:$true] %s347
          %s349 = sshll.u32 %s345, 4
          %s350 = int_to_ptr.hbm [resolvable:$true] %s349
          %352 = dma.vmem_to_hbm [thread:$0]  %s348, 128, %s350, %s335
        $region32: #{tpu_custom_call.1} parent=27 // pred_fallthru
          _
      $region28: #{tpu_custom_call.1} parent=5 // pred_fallthru
        _
      %p353 = scmp.le.s32.totalorder 2, %s11
      // Predicated region
      $region33: #{tpu_custom_call.1} parent=5 // pred_check
        %p354 = pneg %p353
      $region34: #{tpu_custom_call.1} parent=5 // pred_check_branch
        %356 = sbr.rel (%p354) target = $region36
      $region35: #{tpu_custom_call.1} parent=5 // pred_region
        %s357 = ssub.s32 %s11, 2
        // Predicated region
        $region37: #{tpu_custom_call.1} parent=35 // pred_check
          %p358 = pneg %p87
        $region38: #{tpu_custom_call.1} parent=35 // pred_check_branch
          %360 = sbr.rel (%p358) target = $region40
        $region39: #{tpu_custom_call.1} parent=35 // pred_region
          %s361 = sand.u32 %s72, 1
          %s362 = scalar_lea.sflag [#allocation3], %s361
          %s363 = sand.u32 %s72, 1
          %s364 = smul.addr %s363, 8
          %s365 = scalar_lea.vmem [#allocation2], %s364
          %367 = dma.done %s362, 128
        $region40: #{tpu_custom_call.1} parent=35 // pred_fallthru
          _
      $region36: #{tpu_custom_call.1} parent=5 // pred_fallthru
        _
    $region6: #{tpu_custom_call.1} parent=1 // loop_footer
      %s15 = sadd.s32 1, %s11
    $region7: #{tpu_custom_call.1} parent=1 // loop_footer_branch
      %10 = sbr.rel target = $region3
    $region8: #{tpu_custom_call.1} parent=1 // loop_exit
      _
    %368 = vsyncpa [#allocation3], 1
    %s369 = scalar_lea.sflag [#allocation3], 1
    %370 = vsyncpa %s369, 1

</llo_original>
